<compile_context>
chip_gen: v7x
topology: tpu7x:2x2x1
jax: 0.10.0
libtpu: 0.0.40
codegen_flags: <defaults>
</compile_context>

<pallas_src>
import functools

import jax
import jax.numpy as jnp
from jax.experimental import pallas as pl
from jax.experimental.pallas import tpu as pltpu


def _round_up(x: int, m: int) -> int:
    return (x + m - 1) // m * m


def dqn_kernel(x_ref, w1_ref, w2_ref, o_ref):
    # fc1 (+ folded bias): (TB, IN_P)bf16 @ (IN_P, HID_P)bf16 -> f32 on the MXU.
    h = jnp.dot(x_ref[...], w1_ref[...], preferred_element_type=jnp.float32)
    # ReLU in f32 on the VPU (portable to v5e), cast to bf16 for the 2nd MXU pass.
    h = jnp.maximum(h, 0.0).astype(jnp.bfloat16)
    # out (+ folded bias): accumulate in f32, lane-dense f32 store.
    o_ref[...] = jnp.dot(
        h, w2_ref[...], preferred_element_type=jnp.float32
    ).astype(o_ref.dtype)


def prepare_dqn_params(w1, b1, w2, b2):
    """One-time (outside the per-call path) padding / bias folding / bf16 cast.

    w1: (in_size, hidden), b1: (1, hidden), w2: (hidden, out_size), b2: (1, out_size).
    Returns bf16 (IN_P, HID_P) and (HID_P, OUT_P) weight slabs with the biases
    folded in via a ones column in x (index in_size) and a constant hidden
    column (index hidden) that survives ReLU.
    """
    in_size, hidden = w1.shape
    out_size = w2.shape[1]
    IN_P = _round_up(in_size + 1, 128)   # +1: ones column carrying b1
    HID_P = _round_up(hidden + 1, 128)   # +1: constant column carrying b2
    OUT_P = _round_up(out_size, 128)

    w1p = jnp.zeros((IN_P, HID_P), jnp.float32)
    w1p = w1p.at[:in_size, :hidden].set(w1.astype(jnp.float32))
    w1p = w1p.at[in_size, :hidden].set(b1.reshape(-1).astype(jnp.float32))  # fold b1
    w1p = w1p.at[in_size, hidden].set(1.0)  # h[:, hidden] == 1 after ReLU -> carries b2

    w2p = jnp.zeros((HID_P, OUT_P), jnp.float32)
    w2p = w2p.at[:hidden, :out_size].set(w2.astype(jnp.float32))
    w2p = w2p.at[hidden, :out_size].set(b2.reshape(-1).astype(jnp.float32))  # fold b2

    return w1p.astype(jnp.bfloat16), w2p.astype(jnp.bfloat16)


@functools.partial(jax.jit, static_argnames=("out_size", "n_tiles"))
def dqn_forward(x, w1p, w2p, *, out_size, n_tiles=1):
    """x: (B, in_size) f32; w1p/w2p from prepare_dqn_params.
    Returns (B, out_size) f32."""
    B, in_size = x.shape
    IN_P, HID_P = w1p.shape
    OUT_P = w2p.shape[1]

    # Tile derived from the batch (no over-padding): one tile per TensorCore.
    TB = _round_up(pl.cdiv(B, n_tiles), 8)
    B_P = n_tiles * TB

    # x tile: real features | ones column (carries fc1 bias) | zero padding.
    xp = jnp.concatenate(
        [x.astype(jnp.bfloat16),
         jnp.ones((B, 1), jnp.bfloat16),
         jnp.zeros((B, IN_P - in_size - 1), jnp.bfloat16)],
        axis=1)
    xp = jnp.pad(xp, ((0, B_P - B), (0, 0)))

    flops = 2 * B_P * (IN_P * HID_P + HID_P * OUT_P)
    bytes_accessed = (xp.size * 2 + w1p.size * 2 + w2p.size * 2
                      + B_P * OUT_P * 4)
    cost = pl.CostEstimate(flops=flops, transcendentals=0,
                           bytes_accessed=bytes_accessed)

    out_padded = pl.pallas_call(
        dqn_kernel,
        out_shape=jax.ShapeDtypeStruct((B_P, OUT_P), jnp.float32),
        grid=(n_tiles,),
        in_specs=[
            pl.BlockSpec((TB, IN_P), lambda i: (i, 0)),      # x: one tile per core/step
            pl.BlockSpec((IN_P, HID_P), lambda i: (0, 0)),   # w1 (+b1): VMEM-resident
            pl.BlockSpec((HID_P, OUT_P), lambda i: (0, 0)),  # w2 (+b2): VMEM-resident
        ],
        out_specs=pl.BlockSpec((TB, OUT_P), lambda i: (i, 0)),  # lane-dense store
        compiler_params=pltpu.CompilerParams(
            dimension_semantics=("parallel",),  # shard batch tiles across TCs (v7x)
        ),
        cost_estimate=cost,
    )(xp, w1p, w2p)

    # Padded rows/lanes are never consumed; slice to the logical shape.
    return out_padded[:B, :out_size]


def init_linear_params(key, in_features, out_features):
    """Deterministic init mirroring nn.Linear's U(-1/sqrt(in), 1/sqrt(in)).
    Weight returned already transposed to (in_features, out_features)."""
    kw, kb = jax.random.split(key)
    bound = 1.0 / jnp.sqrt(jnp.float32(in_features))
    w = jax.random.uniform(kw, (in_features, out_features), jnp.float32, -bound, bound)
    b = jax.random.uniform(kb, (1, out_features), jnp.float32, -bound, bound)
    return w, b


def _default_n_tiles() -> int:
    """1 grid step on single-TC parts (v5e/v6e); one tile per core otherwise (v7x)."""
    try:
        return max(1, int(getattr(jax.devices()[0], "num_cores", 1)))
    except Exception:
        return 1


if __name__ == "__main__":
    # DQN(in_size, hidden_size, out_size) at a replay-buffer-sized batch that
    # exercises batch tiling + feature padding + bias folding.
    batch, in_size, hidden_size, out_size = 300, 16, 32, 4

    key = jax.random.PRNGKey(0)
    kx, k1, k2 = jax.random.split(key, 3)

    x = jax.random.normal(kx, (batch, in_size), jnp.float32)
    w1, b1 = init_linear_params(k1, in_size, hidden_size)
    w2, b2 = init_linear_params(k2, hidden_size, out_size)

    # One-time weight prep (outside the per-call path).
    w1p, w2p = prepare_dqn_params(w1, b1, w2, b2)

    n_tiles = min(_default_n_tiles(), max(1, batch // 8))
    out = dqn_forward(x, w1p, w2p, out_size=out_size, n_tiles=n_tiles)
    out = jax.block_until_ready(out)
    assert out.shape == (batch, out_size)

    # Reference 1: same bf16-operand / f32-accumulate recipe as the kernel
    # (biases stored as bf16 because they are folded into the bf16 weights).
    x_bf = x.astype(jnp.bfloat16)
    w1_bf, b1_bf = w1.astype(jnp.bfloat16), b1.astype(jnp.bfloat16)
    w2_bf, b2_bf = w2.astype(jnp.bfloat16), b2.astype(jnp.bfloat16)
    h_ref = jnp.maximum(
        jnp.dot(x_bf, w1_bf, preferred_element_type=jnp.float32)
        + b1_bf.astype(jnp.float32), 0.0)
    ref_bf16 = (jnp.dot(h_ref.astype(jnp.bfloat16), w2_bf,
                        preferred_element_type=jnp.float32)
                + b2_bf.astype(jnp.float32))
    assert jnp.allclose(out, ref_bf16, atol=1e-2, rtol=1e-2)

    # Reference 2: pure-f32 forward (loose tolerance for the bf16 MXU cast).
    ref_f32 = jnp.maximum(x @ w1 + b1, 0.0) @ w2 + b2
    assert jnp.allclose(out, ref_f32, atol=5e-2, rtol=5e-2)

    print("KERNEL_OK")
</pallas_src>

<mosaic_0001>
module attributes {stable_mosaic.version = 11 : i64} {
  func.func @dqn_kernel(%arg0: i32, %arg1: memref<304x128xbf16, #tpu.memory_space<vmem>>, %arg2: memref<128x128xbf16, #tpu.memory_space<vmem>>, %arg3: memref<128x128xbf16, #tpu.memory_space<vmem>>, %arg4: memref<304x128xf32, #tpu.memory_space<vmem>>) attributes {dimension_semantics = [#tpu.dimension_semantics<parallel>], iteration_bounds = array<i64: 1>, scalar_prefetch = 0 : i64, scratch_operands = 0 : i64, tpu.core_type = #tpu.core_type<tc>, window_params = [{transform_indices = @transform_0, window_bounds = array<i64: 304, 128>}, {pipeline_mode = #tpu.pipeline_mode<synchronous>, transform_indices = @transform_1, window_bounds = array<i64: 128, 128>}, {pipeline_mode = #tpu.pipeline_mode<synchronous>, transform_indices = @transform_2, window_bounds = array<i64: 128, 128>}, {transform_indices = @transform_3, window_bounds = array<i64: 304, 128>}]} {
    %c0 = arith.constant 0 : index
    %c0_0 = arith.constant 0 : index
    %0 = vector.load %arg1[%c0, %c0_0] : memref<304x128xbf16, #tpu.memory_space<vmem>>, vector<304x128xbf16>
    %c0_1 = arith.constant 0 : index
    %c0_2 = arith.constant 0 : index
    %1 = vector.load %arg2[%c0_1, %c0_2] : memref<128x128xbf16, #tpu.memory_space<vmem>>, vector<128x128xbf16>
    %cst = arith.constant dense<0.000000e+00> : vector<304x128xf32>
    %2 = tpu.matmul %0, %1, %cst {dimension_numbers = #tpu.dot_dimension_numbers<[1], [0], [0], [1], [0, 0, 1, 1], [], []>} : vector<304x128xbf16>, vector<128x128xbf16>, vector<304x128xf32> -> vector<304x128xf32>
    %cst_3 = arith.constant 0.000000e+00 : f32
    %3 = vector.broadcast %cst_3 : f32 to vector<304x128xf32>
    %4 = arith.maximumf %2, %3 : vector<304x128xf32>
    %5 = arith.truncf %4 : vector<304x128xf32> to vector<304x128xbf16>
    %c0_4 = arith.constant 0 : index
    %c0_5 = arith.constant 0 : index
    %6 = vector.load %arg3[%c0_4, %c0_5] : memref<128x128xbf16, #tpu.memory_space<vmem>>, vector<128x128xbf16>
    %cst_6 = arith.constant dense<0.000000e+00> : vector<304x128xf32>
    %7 = tpu.matmul %5, %6, %cst_6 {dimension_numbers = #tpu.dot_dimension_numbers<[1], [0], [0], [1], [0, 0, 1, 1], [], []>} : vector<304x128xbf16>, vector<128x128xbf16>, vector<304x128xf32> -> vector<304x128xf32>
    %c0_7 = arith.constant 0 : index
    %c0_8 = arith.constant 0 : index
    %8 = vector.load %arg4[%c0_7, %c0_8] : memref<304x128xf32, #tpu.memory_space<vmem>>, vector<304x128xf32>
    tpu.vector_store %arg4[%c0_7, %c0_8], %7 {strides = array<i32>} : memref<304x128xf32, #tpu.memory_space<vmem>>, vector<304x128xf32>,
    return
  }
  func.func @transform_0(%arg0: i32) -> (i32, i32) {
    %c0_i32 = arith.constant 0 : i32
    %c0_i32_0 = arith.constant 0 : i32
    return %arg0, %c0_i32 : i32, i32
  }
  func.func @transform_1(%arg0: i32) -> (i32, i32) {
    %c0_i32 = arith.constant 0 : i32
    %c0_i32_0 = arith.constant 0 : i32
    %c0_i32_1 = arith.constant 0 : i32
    return %c0_i32, %c0_i32_0 : i32, i32
  }
  func.func @transform_2(%arg0: i32) -> (i32, i32) {
    %c0_i32 = arith.constant 0 : i32
    %c0_i32_0 = arith.constant 0 : i32
    %c0_i32_1 = arith.constant 0 : i32
    return %c0_i32, %c0_i32_0 : i32, i32
  }
  func.func @transform_3(%arg0: i32) -> (i32, i32) {
    %c0_i32 = arith.constant 0 : i32
    %c0_i32_0 = arith.constant 0 : i32
    return %arg0, %c0_i32 : i32, i32
  }
}

</mosaic_0001>

<llo_original>
// kernel: dqn_forward.1
$region0: #{dqn_forward.1}
  #allocation0 [shape = 'u32[]', space=smem, size = 0x4, offset = 0x4, fixed_abs, tag = 'smem constant byte address 0x4 - core index']
  #allocation1 [shape = 'u32[144,128]{1,0:T(1,128)}', space=vmem, size = 0x12000, scoped, tag = 'internal scratch']
  %s0 = inlined_call_operand.vmem [shape: bf16[304,128], index: 0, kind: input, shape index: {}]
  %s1 = inlined_call_operand.vmem [shape: bf16[128,128], index: 1, kind: input, shape index: {}]
  %s2 = inlined_call_operand.vmem [shape: bf16[128,128], index: 2, kind: input, shape index: {}]
  %s3 = inlined_call_operand.vmem [shape: f32[304,128], index: 3, kind: output, shape index: {}]
  %s4 = sld [smem:[#allocation0]]
  $region22: #{dqn_forward.1} parent=0
    _
  %s6 = ssub.s32 1, %s4
  %s7 = scalar_select 0, %s6, %s4
  // Predicated region
  $region2: #{dqn_forward.1} parent=0 // pred_check
    _
  $region3: #{dqn_forward.1} parent=0 // pred_check_branch
    %9 = sbr.rel (0) target = $region5
  $region4: #{dqn_forward.1} parent=0 // pred_region
    _
  $region5: #{dqn_forward.1} parent=0 // pred_fallthru
    _
  // Predicated region
  $region6: #{dqn_forward.1} parent=0 // pred_check
    _
  $region7: #{dqn_forward.1} parent=0 // pred_check_branch
    %11 = sbr.rel (0) target = $region9
  $region8: #{dqn_forward.1} parent=0 // pred_region
    _
  $region9: #{dqn_forward.1} parent=0 // pred_fallthru
    _
  // Predicated region
  $region10: #{dqn_forward.1} parent=0 // pred_check
    _
  $region11: #{dqn_forward.1} parent=0 // pred_check_branch
    %13 = sbr.rel (0) target = $region13
  $region12: #{dqn_forward.1} parent=0 // pred_region
    _
  $region13: #{dqn_forward.1} parent=0 // pred_fallthru
    _
  %v15 = vld [vmem:[%s0] sm:$0xf]
  %v16 = vld [vmem:[%s0 + $0x4] sm:$0xf]
  %v17 = vld [vmem:[%s0 + $0x8] sm:$0xf]
  %v18 = vld [vmem:[%s0 + $0xc] sm:$0xf]
  %v19 = vld [vmem:[%s0 + $0x10] sm:$0xf]
  %v20 = vld [vmem:[%s0 + $0x14] sm:$0xf]
  %v21 = vld [vmem:[%s0 + $0x18] sm:$0xf]
  %v22 = vld [vmem:[%s0 + $0x1c] sm:$0xf]
  %v23 = vld [vmem:[%s0 + $0x20] sm:$0xf]
  %v24 = vld [vmem:[%s0 + $0x24] sm:$0xf]
  %v25 = vld [vmem:[%s0 + $0x28] sm:$0xf]
  %v26 = vld [vmem:[%s0 + $0x2c] sm:$0xf]
  %v27 = vld [vmem:[%s0 + $0x30] sm:$0xf]
  %v28 = vld [vmem:[%s0 + $0x34] sm:$0xf]
  %v29 = vld [vmem:[%s0 + $0x38] sm:$0xf]
  %v30 = vld [vmem:[%s0 + $0x3c] sm:$0xf]
  %v31 = vld [vmem:[%s0 + $0x40] sm:$0xf]
  %v32 = vld [vmem:[%s0 + $0x44] sm:$0xf]
  %v33 = vld [vmem:[%s0 + $0x48] sm:$0xf]
  %v34 = vld [vmem:[%s0 + $0x4c] sm:$0xf]
  %v35 = vld [vmem:[%s0 + $0x50] sm:$0xf]
  %v36 = vld [vmem:[%s0 + $0x54] sm:$0xf]
  %v37 = vld [vmem:[%s0 + $0x58] sm:$0xf]
  %v38 = vld [vmem:[%s0 + $0x5c] sm:$0xf]
  %v39 = vld [vmem:[%s0 + $0x60] sm:$0xf]
  %v40 = vld [vmem:[%s0 + $0x64] sm:$0xf]
  %v41 = vld [vmem:[%s0 + $0x68] sm:$0xf]
  %v42 = vld [vmem:[%s0 + $0x6c] sm:$0xf]
  %v43 = vld [vmem:[%s0 + $0x70] sm:$0xf]
  %v44 = vld [vmem:[%s0 + $0x74] sm:$0xf]
  %v45 = vld [vmem:[%s0 + $0x78] sm:$0xf]
  %v46 = vld [vmem:[%s0 + $0x7c] sm:$0xf]
  %v47 = vld [vmem:[%s0 + $0x80] sm:$0xf]
  %v48 = vld [vmem:[%s0 + $0x84] sm:$0xf]
  %v49 = vld [vmem:[%s0 + $0x88] sm:$0xf]
  %v50 = vld [vmem:[%s0 + $0x8c] sm:$0xf]
  %v51 = vld [vmem:[%s0 + $0x90] sm:$0xf]
  %v52 = vld [vmem:[%s0 + $0x94] sm:$0xf]
  %v53 = vld [vmem:[%s1] sm:$0xf]
  %v54 = vld [vmem:[%s1 + $0x4] sm:$0xf]
  %v55 = vld [vmem:[%s1 + $0x8] sm:$0xf]
  %v56 = vld [vmem:[%s1 + $0xc] sm:$0xf]
  %v57 = vld [vmem:[%s1 + $0x10] sm:$0xf]
  %v58 = vld [vmem:[%s1 + $0x14] sm:$0xf]
  %v59 = vld [vmem:[%s1 + $0x18] sm:$0xf]
  %v60 = vld [vmem:[%s1 + $0x1c] sm:$0xf]
  %v61 = vld [vmem:[%s1 + $0x20] sm:$0xf]
  %v62 = vld [vmem:[%s1 + $0x24] sm:$0xf]
  %v63 = vld [vmem:[%s1 + $0x28] sm:$0xf]
  %v64 = vld [vmem:[%s1 + $0x2c] sm:$0xf]
  %v65 = vld [vmem:[%s1 + $0x30] sm:$0xf]
  %v66 = vld [vmem:[%s1 + $0x34] sm:$0xf]
  %v67 = vld [vmem:[%s1 + $0x38] sm:$0xf]
  %v68 = vld [vmem:[%s1 + $0x3c] sm:$0xf]
  %v107 = vunpack.c.l.b16 %v15
  %v108 = vunpack.c.l.b16 %v16
  %v109 = vunpack.c.l.b16 %v17
  %v110 = vunpack.c.l.b16 %v18
  %v111 = vunpack.c.l.b16 %v19
  %v112 = vunpack.c.l.b16 %v20
  %v113 = vunpack.c.l.b16 %v21
  %v114 = vunpack.c.l.b16 %v22
  %v115 = vunpack.c.l.b16 %v23
  %v116 = vunpack.c.l.b16 %v24
  %v117 = vunpack.c.l.b16 %v25
  %v118 = vunpack.c.l.b16 %v26
  %v119 = vunpack.c.l.b16 %v27
  %v120 = vunpack.c.l.b16 %v28
  %v121 = vunpack.c.l.b16 %v29
  %v122 = vunpack.c.l.b16 %v30
  %v123 = vunpack.c.l.b16 %v31
  %v124 = vunpack.c.l.b16 %v32
  %v125 = vunpack.c.l.b16 %v33
  %v126 = vunpack.c.l.b16 %v34
  %v127 = vunpack.c.l.b16 %v35
  %v128 = vunpack.c.l.b16 %v36
  %v129 = vunpack.c.l.b16 %v37
  %v130 = vunpack.c.l.b16 %v38
  %v131 = vunpack.c.l.b16 %v39
  %v132 = vunpack.c.l.b16 %v40
  %v133 = vunpack.c.l.b16 %v41
  %v134 = vunpack.c.l.b16 %v42
  %v135 = vunpack.c.l.b16 %v43
  %v136 = vunpack.c.l.b16 %v44
  %v137 = vunpack.c.l.b16 %v45
  %v138 = vunpack.c.l.b16 %v46
  %v139 = vunpack.c.l.b16 %v47
  %v140 = vunpack.c.l.b16 %v48
  %v141 = vunpack.c.l.b16 %v49
  %v142 = vunpack.c.l.b16 %v50
  %v143 = vunpack.c.l.b16 %v51
  %v144 = vunpack.c.l.b16 %v52
  %v145 = vpack.c.b16 %v108, %v107
  %v146 = vpack.c.b16 %v110, %v109
  %v147 = vpack.c.b16 %v112, %v111
  %v148 = vpack.c.b16 %v114, %v113
  %v149 = vpack.c.b16 %v116, %v115
  %v150 = vpack.c.b16 %v118, %v117
  %v151 = vpack.c.b16 %v120, %v119
  %v152 = vpack.c.b16 %v122, %v121
  %v153 = vpack.c.b16 %v124, %v123
  %v154 = vpack.c.b16 %v126, %v125
  %v155 = vpack.c.b16 %v128, %v127
  %v156 = vpack.c.b16 %v130, %v129
  %v157 = vpack.c.b16 %v132, %v131
  %v158 = vpack.c.b16 %v134, %v133
  %v159 = vpack.c.b16 %v136, %v135
  %v160 = vpack.c.b16 %v138, %v137
  %v161 = vpack.c.b16 %v140, %v139
  %v162 = vpack.c.b16 %v142, %v141
  %v163 = vpack.c.b16 %v144, %v143
  %v199 = vunpack.c.l.b16 %v53
  %v200 = vunpack.c.l.b16 %v54
  %v201 = vunpack.c.l.b16 %v55
  %v202 = vunpack.c.l.b16 %v56
  %v203 = vunpack.c.l.b16 %v57
  %v204 = vunpack.c.l.b16 %v58
  %v205 = vunpack.c.l.b16 %v59
  %v206 = vunpack.c.l.b16 %v60
  %v207 = vunpack.c.l.b16 %v61
  %v208 = vunpack.c.l.b16 %v62
  %v209 = vunpack.c.l.b16 %v63
  %v210 = vunpack.c.l.b16 %v64
  %v211 = vunpack.c.l.b16 %v65
  %v212 = vunpack.c.l.b16 %v66
  %v213 = vunpack.c.l.b16 %v67
  %v214 = vunpack.c.l.b16 %v68
  %v215 = vpack.c.b16 %v200, %v199
  %v216 = vpack.c.b16 %v202, %v201
  %v217 = vpack.c.b16 %v204, %v203
  %v218 = vpack.c.b16 %v206, %v205
  %v219 = vpack.c.b16 %v208, %v207
  %v220 = vpack.c.b16 %v210, %v209
  %v221 = vpack.c.b16 %v212, %v211
  %v222 = vpack.c.b16 %v214, %v213
  %231 = vmatprep.subr.bf16.mxu0 0
  %232 = vmatpush1.bf16.msra.mxu0 %v215
  %233 = vmatprep.subr.bf16.mxu0 0
  %234 = vmatpush1.bf16.msra.mxu0 %v216
  %235 = vmatprep.subr.bf16.mxu0 0
  %236 = vmatpush1.bf16.msra.mxu0 %v217
  %237 = vmatprep.subr.bf16.mxu0 0
  %238 = vmatpush1.bf16.msra.mxu0 %v218
  %239 = vmatprep.subr.bf16.mxu0 0
  %240 = vmatpush1.bf16.msra.mxu0 %v219
  %241 = vmatprep.subr.bf16.mxu0 0
  %242 = vmatpush1.bf16.msra.mxu0 %v220
  %243 = vmatprep.subr.bf16.mxu0 0
  %244 = vmatpush1.bf16.msra.mxu0 %v221
  %245 = vmatprep.subr.bf16.mxu0 0
  %246 = vmatpush1.bf16.msra.mxu0 %v222
  %247 = vmatprep.subr.bf16.mxu0 0
  %248 = vmatpush1.bf16.msra.mxu0 0
  %249 = vmatprep.subr.bf16.mxu0 0
  %250 = vmatpush1.bf16.msra.mxu0 0
  %251 = vmatprep.subr.bf16.mxu0 0
  %252 = vmatpush1.bf16.msra.mxu0 0
  %253 = vmatprep.subr.bf16.mxu0 0
  %254 = vmatpush1.bf16.msra.mxu0 0
  %255 = vmatprep.subr.bf16.mxu0 0
  %256 = vmatpush1.bf16.msra.mxu0 0
  %257 = vmatprep.subr.bf16.mxu0 0
  %258 = vmatpush1.bf16.msra.mxu0 0
  %259 = vmatprep.subr.bf16.mxu0 0
  %260 = vmatpush1.bf16.msra.mxu0 0
  %261 = vmatprep.subr.bf16.mxu0 0
  %262 = vmatpush1.bf16.msra.mxu0 0
  %263 = vmatprep.mubr.bf16.mxu0 0
  %264 = vmatmul.mubr.bf16.gmra.mrb[0].mxu0 %v145
  %v265 = vpop.f32.mrb[0].mxu0
  %v266 = vadd.f32 0.0, %v265
  %v267 = vpop.f32.mrb[0].mxu0
  %v268 = vpop.f32.mrb[0].mxu0
  %v269 = vadd.f32 0.0, %v268
  %v270 = vpop.f32.mrb[0].mxu0
  %271 = vmatprep.mubr.bf16.mxu0 0
  %272 = vmatmul.mubr.bf16.gmra.mrb[0].mxu0 %v146
  %v273 = vpop.f32.mrb[0].mxu0
  %v274 = vadd.f32 0.0, %v273
  %v275 = vpop.f32.mrb[0].mxu0
  %v276 = vpop.f32.mrb[0].mxu0
  %v277 = vadd.f32 0.0, %v276
  %v278 = vpop.f32.mrb[0].mxu0
  %279 = vmatprep.mubr.bf16.mxu0 0
  %280 = vmatmul.mubr.bf16.gmra.mrb[0].mxu0 %v147
  %v281 = vpop.f32.mrb[0].mxu0
  %v282 = vadd.f32 0.0, %v281
  %v283 = vpop.f32.mrb[0].mxu0
  %v284 = vpop.f32.mrb[0].mxu0
  %v285 = vadd.f32 0.0, %v284
  %v286 = vpop.f32.mrb[0].mxu0
  %287 = vmatprep.mubr.bf16.mxu0 0
  %288 = vmatmul.mubr.bf16.gmra.mrb[0].mxu0 %v148
  %v289 = vpop.f32.mrb[0].mxu0
  %v290 = vadd.f32 0.0, %v289
  %v291 = vpop.f32.mrb[0].mxu0
  %v292 = vpop.f32.mrb[0].mxu0
  %v293 = vadd.f32 0.0, %v292
  %v294 = vpop.f32.mrb[0].mxu0
  %295 = vmatprep.mubr.bf16.mxu0 0
  %296 = vmatmul.mubr.bf16.gmra.mrb[0].mxu0 %v149
  %v297 = vpop.f32.mrb[0].mxu0
  %v298 = vadd.f32 0.0, %v297
  %v299 = vpop.f32.mrb[0].mxu0
  %v300 = vpop.f32.mrb[0].mxu0
  %v301 = vadd.f32 0.0, %v300
  %v302 = vpop.f32.mrb[0].mxu0
  %303 = vmatprep.mubr.bf16.mxu0 0
  %304 = vmatmul.mubr.bf16.gmra.mrb[0].mxu0 %v150
  %v305 = vpop.f32.mrb[0].mxu0
  %v306 = vadd.f32 0.0, %v305
  %v307 = vpop.f32.mrb[0].mxu0
  %v308 = vpop.f32.mrb[0].mxu0
  %v309 = vadd.f32 0.0, %v308
  %v310 = vpop.f32.mrb[0].mxu0
  %311 = vmatprep.mubr.bf16.mxu0 0
  %312 = vmatmul.mubr.bf16.gmra.mrb[0].mxu0 %v151
  %v313 = vpop.f32.mrb[0].mxu0
  %v314 = vadd.f32 0.0, %v313
  %v315 = vpop.f32.mrb[0].mxu0
  %v316 = vpop.f32.mrb[0].mxu0
  %v317 = vadd.f32 0.0, %v316
  %v318 = vpop.f32.mrb[0].mxu0
  %319 = vmatprep.mubr.bf16.mxu0 0
  %320 = vmatmul.mubr.bf16.gmra.mrb[0].mxu0 %v152
  %v321 = vpop.f32.mrb[0].mxu0
  %v322 = vadd.f32 0.0, %v321
  %v323 = vpop.f32.mrb[0].mxu0
  %v324 = vpop.f32.mrb[0].mxu0
  %v325 = vadd.f32 0.0, %v324
  %v326 = vpop.f32.mrb[0].mxu0
  %327 = vmatprep.mubr.bf16.mxu0 0
  %328 = vmatmul.mubr.bf16.gmra.mrb[0].mxu0 %v153
  %v329 = vpop.f32.mrb[0].mxu0
  %v330 = vadd.f32 0.0, %v329
  %v331 = vpop.f32.mrb[0].mxu0
  %v332 = vpop.f32.mrb[0].mxu0
  %v333 = vadd.f32 0.0, %v332
  %v334 = vpop.f32.mrb[0].mxu0
  %335 = vmatprep.mubr.bf16.mxu0 0
  %336 = vmatmul.mubr.bf16.gmra.mrb[0].mxu0 %v154
  %v337 = vpop.f32.mrb[0].mxu0
  %v338 = vadd.f32 0.0, %v337
  %v339 = vpop.f32.mrb[0].mxu0
  %v340 = vpop.f32.mrb[0].mxu0
  %v341 = vadd.f32 0.0, %v340
  %v342 = vpop.f32.mrb[0].mxu0
  %343 = vmatprep.mubr.bf16.mxu0 0
  %344 = vmatmul.mubr.bf16.gmra.mrb[0].mxu0 %v155
  %v345 = vpop.f32.mrb[0].mxu0
  %v346 = vadd.f32 0.0, %v345
  %v347 = vpop.f32.mrb[0].mxu0
  %v348 = vpop.f32.mrb[0].mxu0
  %v349 = vadd.f32 0.0, %v348
  %v350 = vpop.f32.mrb[0].mxu0
  %351 = vmatprep.mubr.bf16.mxu0 0
  %352 = vmatmul.mubr.bf16.gmra.mrb[0].mxu0 %v156
  %v353 = vpop.f32.mrb[0].mxu0
  %v354 = vadd.f32 0.0, %v353
  %v355 = vpop.f32.mrb[0].mxu0
  %v356 = vpop.f32.mrb[0].mxu0
  %v357 = vadd.f32 0.0, %v356
  %v358 = vpop.f32.mrb[0].mxu0
  %359 = vmatprep.mubr.bf16.mxu0 0
  %360 = vmatmul.mubr.bf16.gmra.mrb[0].mxu0 %v157
  %v361 = vpop.f32.mrb[0].mxu0
  %v362 = vadd.f32 0.0, %v361
  %v363 = vpop.f32.mrb[0].mxu0
  %v364 = vpop.f32.mrb[0].mxu0
  %v365 = vadd.f32 0.0, %v364
  %v366 = vpop.f32.mrb[0].mxu0
  %367 = vmatprep.mubr.bf16.mxu0 0
  %368 = vmatmul.mubr.bf16.gmra.mrb[0].mxu0 %v158
  %v369 = vpop.f32.mrb[0].mxu0
  %v370 = vadd.f32 0.0, %v369
  %v371 = vpop.f32.mrb[0].mxu0
  %v372 = vpop.f32.mrb[0].mxu0
  %v373 = vadd.f32 0.0, %v372
  %v374 = vpop.f32.mrb[0].mxu0
  %375 = vmatprep.mubr.bf16.mxu0 0
  %376 = vmatmul.mubr.bf16.gmra.mrb[0].mxu0 %v159
  %v377 = vpop.f32.mrb[0].mxu0
  %v378 = vadd.f32 0.0, %v377
  %v379 = vpop.f32.mrb[0].mxu0
  %v380 = vpop.f32.mrb[0].mxu0
  %v381 = vadd.f32 0.0, %v380
  %v382 = vpop.f32.mrb[0].mxu0
  %383 = vmatprep.mubr.bf16.mxu0 0
  %384 = vmatmul.mubr.bf16.gmra.mrb[0].mxu0 %v160
  %v385 = vpop.f32.mrb[0].mxu0
  %v386 = vadd.f32 0.0, %v385
  %v387 = vpop.f32.mrb[0].mxu0
  %v388 = vpop.f32.mrb[0].mxu0
  %v389 = vadd.f32 0.0, %v388
  %v390 = vpop.f32.mrb[0].mxu0
  %391 = vmatprep.mubr.bf16.mxu0 0
  %392 = vmatmul.mubr.bf16.gmra.mrb[0].mxu0 %v161
  %v393 = vpop.f32.mrb[0].mxu0
  %v394 = vadd.f32 0.0, %v393
  %v395 = vpop.f32.mrb[0].mxu0
  %v396 = vpop.f32.mrb[0].mxu0
  %v397 = vadd.f32 0.0, %v396
  %v398 = vpop.f32.mrb[0].mxu0
  %399 = vmatprep.mubr.bf16.mxu0 0
  %400 = vmatmul.mubr.bf16.gmra.mrb[0].mxu0 %v162
  %v401 = vpop.f32.mrb[0].mxu0
  %v402 = vadd.f32 0.0, %v401
  %v403 = vpop.f32.mrb[0].mxu0
  %v404 = vpop.f32.mrb[0].mxu0
  %v405 = vadd.f32 0.0, %v404
  %v406 = vpop.f32.mrb[0].mxu0
  %407 = vmatprep.mubr.bf16.mxu0 0
  %408 = vmatmul.mubr.bf16.gmra.mrb[0].mxu0 %v163
  %v409 = vpop.f32.mrb[0].mxu0
  %v410 = vadd.f32 0.0, %v409
  %v411 = vpop.f32.mrb[0].mxu0
  %v412 = vpop.f32.mrb[0].mxu0
  %v413 = vadd.f32 0.0, %v412
  %v414 = vpop.f32.mrb[0].mxu0
  %415 = vdwg.mxu0
  %v416 = vmax.f32 %v266, 0.0
  %v417 = vmax.f32 %v269, 0.0
  %v418 = vmax.f32 %v274, 0.0
  %v419 = vmax.f32 %v277, 0.0
  %v420 = vmax.f32 %v282, 0.0
  %v421 = vmax.f32 %v285, 0.0
  %v422 = vmax.f32 %v290, 0.0
  %v423 = vmax.f32 %v293, 0.0
  %v424 = vmax.f32 %v298, 0.0
  %v425 = vmax.f32 %v301, 0.0
  %v426 = vmax.f32 %v306, 0.0
  %v427 = vmax.f32 %v309, 0.0
  %v428 = vmax.f32 %v314, 0.0
  %v429 = vmax.f32 %v317, 0.0
  %v430 = vmax.f32 %v322, 0.0
  %v431 = vmax.f32 %v325, 0.0
  %v432 = vmax.f32 %v330, 0.0
  %v433 = vmax.f32 %v333, 0.0
  %v434 = vmax.f32 %v338, 0.0
  %v435 = vmax.f32 %v341, 0.0
  %v436 = vmax.f32 %v346, 0.0
  %v437 = vmax.f32 %v349, 0.0
  %v438 = vmax.f32 %v354, 0.0
  %v439 = vmax.f32 %v357, 0.0
  %v440 = vmax.f32 %v362, 0.0
  %v441 = vmax.f32 %v365, 0.0
  %v442 = vmax.f32 %v370, 0.0
  %v443 = vmax.f32 %v373, 0.0
  %v444 = vmax.f32 %v378, 0.0
  %v445 = vmax.f32 %v381, 0.0
  %v446 = vmax.f32 %v386, 0.0
  %v447 = vmax.f32 %v389, 0.0
  %v448 = vmax.f32 %v394, 0.0
  %v449 = vmax.f32 %v397, 0.0
  %v450 = vmax.f32 %v402, 0.0
  %v451 = vmax.f32 %v405, 0.0
  %v452 = vmax.f32 %v410, 0.0
  %v453 = vmax.f32 %v413, 0.0
  %v454 = vpack.c.bf16 %v417, %v416
  %v455 = vpack.c.bf16 %v419, %v418
  %v456 = vpack.c.bf16 %v421, %v420
  %v457 = vpack.c.bf16 %v423, %v422
  %v458 = vpack.c.bf16 %v425, %v424
  %v459 = vpack.c.bf16 %v427, %v426
  %v460 = vpack.c.bf16 %v429, %v428
  %v461 = vpack.c.bf16 %v431, %v430
  %v462 = vpack.c.bf16 %v433, %v432
  %v463 = vpack.c.bf16 %v435, %v434
  %v464 = vpack.c.bf16 %v437, %v436
  %v465 = vpack.c.bf16 %v439, %v438
  %v466 = vpack.c.bf16 %v441, %v440
  %v467 = vpack.c.bf16 %v443, %v442
  %v468 = vpack.c.bf16 %v445, %v444
  %v469 = vpack.c.bf16 %v447, %v446
  %v470 = vpack.c.bf16 %v449, %v448
  %v471 = vpack.c.bf16 %v451, %v450
  %v472 = vpack.c.bf16 %v453, %v452
  %v473 = vld [vmem:[%s2] sm:$0xf]
  %v474 = vld [vmem:[%s2 + $0x4] sm:$0xf]
  %v475 = vld [vmem:[%s2 + $0x8] sm:$0xf]
  %v476 = vld [vmem:[%s2 + $0xc] sm:$0xf]
  %v477 = vld [vmem:[%s2 + $0x10] sm:$0xf]
  %v478 = vld [vmem:[%s2 + $0x14] sm:$0xf]
  %v479 = vld [vmem:[%s2 + $0x18] sm:$0xf]
  %v480 = vld [vmem:[%s2 + $0x1c] sm:$0xf]
  %v481 = vld [vmem:[%s2 + $0x20] sm:$0xf]
  %v482 = vld [vmem:[%s2 + $0x24] sm:$0xf]
  %v483 = vld [vmem:[%s2 + $0x28] sm:$0xf]
  %v484 = vld [vmem:[%s2 + $0x2c] sm:$0xf]
  %v485 = vld [vmem:[%s2 + $0x30] sm:$0xf]
  %v486 = vld [vmem:[%s2 + $0x34] sm:$0xf]
  %v487 = vld [vmem:[%s2 + $0x38] sm:$0xf]
  %v488 = vld [vmem:[%s2 + $0x3c] sm:$0xf]
  %v505 = vunpack.c.l.b16 %v473
  %v506 = vunpack.c.l.b16 %v474
  %v507 = vunpack.c.l.b16 %v475
  %v508 = vunpack.c.l.b16 %v476
  %v509 = vunpack.c.l.b16 %v477
  %v510 = vunpack.c.l.b16 %v478
  %v511 = vunpack.c.l.b16 %v479
  %v512 = vunpack.c.l.b16 %v480
  %v513 = vunpack.c.l.b16 %v481
  %v514 = vunpack.c.l.b16 %v482
  %v515 = vunpack.c.l.b16 %v483
  %v516 = vunpack.c.l.b16 %v484
  %v517 = vunpack.c.l.b16 %v485
  %v518 = vunpack.c.l.b16 %v486
  %v519 = vunpack.c.l.b16 %v487
  %v520 = vunpack.c.l.b16 %v488
  %v521 = vpack.c.b16 %v506, %v505
  %v522 = vpack.c.b16 %v508, %v507
  %v523 = vpack.c.b16 %v510, %v509
  %v524 = vpack.c.b16 %v512, %v511
  %v525 = vpack.c.b16 %v514, %v513
  %v526 = vpack.c.b16 %v516, %v515
  %v527 = vpack.c.b16 %v518, %v517
  %v528 = vpack.c.b16 %v520, %v519
  %537 = vmatprep.subr.bf16.mxu0 0
  %538 = vmatpush1.bf16.msra.mxu0 %v521
  %539 = vmatprep.subr.bf16.mxu0 0
  %540 = vmatpush1.bf16.msra.mxu0 %v522
  %541 = vmatprep.subr.bf16.mxu0 0
  %542 = vmatpush1.bf16.msra.mxu0 %v523
  %543 = vmatprep.subr.bf16.mxu0 0
  %544 = vmatpush1.bf16.msra.mxu0 %v524
  %545 = vmatprep.subr.bf16.mxu0 0
  %546 = vmatpush1.bf16.msra.mxu0 %v525
  %547 = vmatprep.subr.bf16.mxu0 0
  %548 = vmatpush1.bf16.msra.mxu0 %v526
  %549 = vmatprep.subr.bf16.mxu0 0
  %550 = vmatpush1.bf16.msra.mxu0 %v527
  %551 = vmatprep.subr.bf16.mxu0 0
  %552 = vmatpush1.bf16.msra.mxu0 %v528
  %553 = vmatprep.subr.bf16.mxu0 0
  %554 = vmatpush1.bf16.msra.mxu0 0
  %555 = vmatprep.subr.bf16.mxu0 0
  %556 = vmatpush1.bf16.msra.mxu0 0
  %557 = vmatprep.subr.bf16.mxu0 0
  %558 = vmatpush1.bf16.msra.mxu0 0
  %559 = vmatprep.subr.bf16.mxu0 0
  %560 = vmatpush1.bf16.msra.mxu0 0
  %561 = vmatprep.subr.bf16.mxu0 0
  %562 = vmatpush1.bf16.msra.mxu0 0
  %563 = vmatprep.subr.bf16.mxu0 0
  %564 = vmatpush1.bf16.msra.mxu0 0
  %565 = vmatprep.subr.bf16.mxu0 0
  %566 = vmatpush1.bf16.msra.mxu0 0
  %567 = vmatprep.subr.bf16.mxu0 0
  %568 = vmatpush1.bf16.msra.mxu0 0
  %569 = vmatprep.mubr.bf16.mxu0 0
  %570 = vmatmul.mubr.bf16.gmra.mrb[0].mxu0 %v454
  %v571 = vpop.f32.mrb[0].mxu0
  %v572 = vadd.f32 0.0, %v571
  %v573 = vpop.f32.mrb[0].mxu0
  %v574 = vpop.f32.mrb[0].mxu0
  %v575 = vadd.f32 0.0, %v574
  %v576 = vpop.f32.mrb[0].mxu0
  %577 = vmatprep.mubr.bf16.mxu0 0
  %578 = vmatmul.mubr.bf16.gmra.mrb[0].mxu0 %v455
  %v579 = vpop.f32.mrb[0].mxu0
  %v580 = vadd.f32 0.0, %v579
  %v581 = vpop.f32.mrb[0].mxu0
  %v582 = vpop.f32.mrb[0].mxu0
  %v583 = vadd.f32 0.0, %v582
  %v584 = vpop.f32.mrb[0].mxu0
  %585 = vmatprep.mubr.bf16.mxu0 0
  %586 = vmatmul.mubr.bf16.gmra.mrb[0].mxu0 %v456
  %v587 = vpop.f32.mrb[0].mxu0
  %v588 = vadd.f32 0.0, %v587
  %v589 = vpop.f32.mrb[0].mxu0
  %v590 = vpop.f32.mrb[0].mxu0
  %v591 = vadd.f32 0.0, %v590
  %v592 = vpop.f32.mrb[0].mxu0
  %593 = vmatprep.mubr.bf16.mxu0 0
  %594 = vmatmul.mubr.bf16.gmra.mrb[0].mxu0 %v457
  %v595 = vpop.f32.mrb[0].mxu0
  %v596 = vadd.f32 0.0, %v595
  %v597 = vpop.f32.mrb[0].mxu0
  %v598 = vpop.f32.mrb[0].mxu0
  %v599 = vadd.f32 0.0, %v598
  %v600 = vpop.f32.mrb[0].mxu0
  %601 = vmatprep.mubr.bf16.mxu0 0
  %602 = vmatmul.mubr.bf16.gmra.mrb[0].mxu0 %v458
  %v603 = vpop.f32.mrb[0].mxu0
  %v604 = vadd.f32 0.0, %v603
  %v605 = vpop.f32.mrb[0].mxu0
  %v606 = vpop.f32.mrb[0].mxu0
  %v607 = vadd.f32 0.0, %v606
  %v608 = vpop.f32.mrb[0].mxu0
  %609 = vmatprep.mubr.bf16.mxu0 0
  %610 = vmatmul.mubr.bf16.gmra.mrb[0].mxu0 %v459
  %v611 = vpop.f32.mrb[0].mxu0
  %v612 = vadd.f32 0.0, %v611
  %v613 = vpop.f32.mrb[0].mxu0
  %v614 = vpop.f32.mrb[0].mxu0
  %v615 = vadd.f32 0.0, %v614
  %v616 = vpop.f32.mrb[0].mxu0
  %617 = vmatprep.mubr.bf16.mxu0 0
  %618 = vmatmul.mubr.bf16.gmra.mrb[0].mxu0 %v460
  %v619 = vpop.f32.mrb[0].mxu0
  %v620 = vadd.f32 0.0, %v619
  %v621 = vpop.f32.mrb[0].mxu0
  %v622 = vpop.f32.mrb[0].mxu0
  %v623 = vadd.f32 0.0, %v622
  %v624 = vpop.f32.mrb[0].mxu0
  %625 = vmatprep.mubr.bf16.mxu0 0
  %626 = vmatmul.mubr.bf16.gmra.mrb[0].mxu0 %v461
  %v627 = vpop.f32.mrb[0].mxu0
  %v628 = vadd.f32 0.0, %v627
  %v629 = vpop.f32.mrb[0].mxu0
  %v630 = vpop.f32.mrb[0].mxu0
  %v631 = vadd.f32 0.0, %v630
  %v632 = vpop.f32.mrb[0].mxu0
  %633 = vmatprep.mubr.bf16.mxu0 0
  %634 = vmatmul.mubr.bf16.gmra.mrb[0].mxu0 %v462
  %v635 = vpop.f32.mrb[0].mxu0
  %v636 = vadd.f32 0.0, %v635
  %v637 = vpop.f32.mrb[0].mxu0
  %v638 = vpop.f32.mrb[0].mxu0
  %v639 = vadd.f32 0.0, %v638
  %v640 = vpop.f32.mrb[0].mxu0
  %641 = vmatprep.mubr.bf16.mxu0 0
  %642 = vmatmul.mubr.bf16.gmra.mrb[0].mxu0 %v463
  %v643 = vpop.f32.mrb[0].mxu0
  %v644 = vadd.f32 0.0, %v643
  %v645 = vpop.f32.mrb[0].mxu0
  %v646 = vpop.f32.mrb[0].mxu0
  %v647 = vadd.f32 0.0, %v646
  %v648 = vpop.f32.mrb[0].mxu0
  %649 = vmatprep.mubr.bf16.mxu0 0
  %650 = vmatmul.mubr.bf16.gmra.mrb[0].mxu0 %v464
  %v651 = vpop.f32.mrb[0].mxu0
  %v652 = vadd.f32 0.0, %v651
  %v653 = vpop.f32.mrb[0].mxu0
  %v654 = vpop.f32.mrb[0].mxu0
  %v655 = vadd.f32 0.0, %v654
  %v656 = vpop.f32.mrb[0].mxu0
  %657 = vmatprep.mubr.bf16.mxu0 0
  %658 = vmatmul.mubr.bf16.gmra.mrb[0].mxu0 %v465
  %v659 = vpop.f32.mrb[0].mxu0
  %v660 = vadd.f32 0.0, %v659
  %v661 = vpop.f32.mrb[0].mxu0
  %v662 = vpop.f32.mrb[0].mxu0
  %v663 = vadd.f32 0.0, %v662
  %v664 = vpop.f32.mrb[0].mxu0
  %665 = vmatprep.mubr.bf16.mxu0 0
  %666 = vmatmul.mubr.bf16.gmra.mrb[0].mxu0 %v466
  %v667 = vpop.f32.mrb[0].mxu0
  %v668 = vadd.f32 0.0, %v667
  %v669 = vpop.f32.mrb[0].mxu0
  %v670 = vpop.f32.mrb[0].mxu0
  %v671 = vadd.f32 0.0, %v670
  %v672 = vpop.f32.mrb[0].mxu0
  %673 = vmatprep.mubr.bf16.mxu0 0
  %674 = vmatmul.mubr.bf16.gmra.mrb[0].mxu0 %v467
  %v675 = vpop.f32.mrb[0].mxu0
  %v676 = vadd.f32 0.0, %v675
  %v677 = vpop.f32.mrb[0].mxu0
  %v678 = vpop.f32.mrb[0].mxu0
  %v679 = vadd.f32 0.0, %v678
  %v680 = vpop.f32.mrb[0].mxu0
  %681 = vmatprep.mubr.bf16.mxu0 0
  %682 = vmatmul.mubr.bf16.gmra.mrb[0].mxu0 %v468
  %v683 = vpop.f32.mrb[0].mxu0
  %v684 = vadd.f32 0.0, %v683
  %v685 = vpop.f32.mrb[0].mxu0
  %v686 = vpop.f32.mrb[0].mxu0
  %v687 = vadd.f32 0.0, %v686
  %v688 = vpop.f32.mrb[0].mxu0
  %689 = vmatprep.mubr.bf16.mxu0 0
  %690 = vmatmul.mubr.bf16.gmra.mrb[0].mxu0 %v469
  %v691 = vpop.f32.mrb[0].mxu0
  %v692 = vadd.f32 0.0, %v691
  %v693 = vpop.f32.mrb[0].mxu0
  %v694 = vpop.f32.mrb[0].mxu0
  %v695 = vadd.f32 0.0, %v694
  %v696 = vpop.f32.mrb[0].mxu0
  %697 = vmatprep.mubr.bf16.mxu0 0
  %698 = vmatmul.mubr.bf16.gmra.mrb[0].mxu0 %v470
  %v699 = vpop.f32.mrb[0].mxu0
  %v700 = vadd.f32 0.0, %v699
  %v701 = vpop.f32.mrb[0].mxu0
  %v702 = vpop.f32.mrb[0].mxu0
  %v703 = vadd.f32 0.0, %v702
  %v704 = vpop.f32.mrb[0].mxu0
  %705 = vmatprep.mubr.bf16.mxu0 0
  %706 = vmatmul.mubr.bf16.gmra.mrb[0].mxu0 %v471
  %v707 = vpop.f32.mrb[0].mxu0
  %v708 = vadd.f32 0.0, %v707
  %v709 = vpop.f32.mrb[0].mxu0
  %v710 = vpop.f32.mrb[0].mxu0
  %v711 = vadd.f32 0.0, %v710
  %v712 = vpop.f32.mrb[0].mxu0
  %713 = vmatprep.mubr.bf16.mxu0 0
  %714 = vmatmul.mubr.bf16.gmra.mrb[0].mxu0 %v472
  %v715 = vpop.f32.mrb[0].mxu0
  %v716 = vadd.f32 0.0, %v715
  %v717 = vpop.f32.mrb[0].mxu0
  %v718 = vpop.f32.mrb[0].mxu0
  %v719 = vadd.f32 0.0, %v718
  %v720 = vpop.f32.mrb[0].mxu0
  %721 = vdwg.mxu0
  %722 = vst [vmem:[%s3] sm:$0xff] %v572
  %723 = vst [vmem:[%s3 + $0x8] sm:$0xff] %v575
  %724 = vst [vmem:[%s3 + $0x10] sm:$0xff] %v580
  %725 = vst [vmem:[%s3 + $0x18] sm:$0xff] %v583
  %726 = vst [vmem:[%s3 + $0x20] sm:$0xff] %v588
  %727 = vst [vmem:[%s3 + $0x28] sm:$0xff] %v591
  %728 = vst [vmem:[%s3 + $0x30] sm:$0xff] %v596
  %729 = vst [vmem:[%s3 + $0x38] sm:$0xff] %v599
  %730 = vst [vmem:[%s3 + $0x40] sm:$0xff] %v604
  %731 = vst [vmem:[%s3 + $0x48] sm:$0xff] %v607
  %732 = vst [vmem:[%s3 + $0x50] sm:$0xff] %v612
  %733 = vst [vmem:[%s3 + $0x58] sm:$0xff] %v615
  %734 = vst [vmem:[%s3 + $0x60] sm:$0xff] %v620
  %735 = vst [vmem:[%s3 + $0x68] sm:$0xff] %v623
  %736 = vst [vmem:[%s3 + $0x70] sm:$0xff] %v628
  %737 = vst [vmem:[%s3 + $0x78] sm:$0xff] %v631
  %738 = vst [vmem:[%s3 + $0x80] sm:$0xff] %v636
  %739 = vst [vmem:[%s3 + $0x88] sm:$0xff] %v639
  %740 = vst [vmem:[%s3 + $0x90] sm:$0xff] %v644
  %741 = vst [vmem:[%s3 + $0x98] sm:$0xff] %v647
  %742 = vst [vmem:[%s3 + $0xa0] sm:$0xff] %v652
  %743 = vst [vmem:[%s3 + $0xa8] sm:$0xff] %v655
  %744 = vst [vmem:[%s3 + $0xb0] sm:$0xff] %v660
  %745 = vst [vmem:[%s3 + $0xb8] sm:$0xff] %v663
  %746 = vst [vmem:[%s3 + $0xc0] sm:$0xff] %v668
  %747 = vst [vmem:[%s3 + $0xc8] sm:$0xff] %v671
  %748 = vst [vmem:[%s3 + $0xd0] sm:$0xff] %v676
  %749 = vst [vmem:[%s3 + $0xd8] sm:$0xff] %v679
  %750 = vst [vmem:[%s3 + $0xe0] sm:$0xff] %v684
  %751 = vst [vmem:[%s3 + $0xe8] sm:$0xff] %v687
  %752 = vst [vmem:[%s3 + $0xf0] sm:$0xff] %v692
  %753 = vst [vmem:[%s3 + $0xf8] sm:$0xff] %v695
  %754 = vst [vmem:[%s3 + $0x100] sm:$0xff] %v700
  %755 = vst [vmem:[%s3 + $0x108] sm:$0xff] %v703
  %756 = vst [vmem:[%s3 + $0x110] sm:$0xff] %v708
  %757 = vst [vmem:[%s3 + $0x118] sm:$0xff] %v711
  %758 = vst [vmem:[%s3 + $0x120] sm:$0xff] %v716
  %759 = vst [vmem:[%s3 + $0x128] sm:$0xff] %v719
  // Predicated region
  $region14: #{dqn_forward.1} parent=0 // pred_check
    _
  $region15: #{dqn_forward.1} parent=0 // pred_check_branch
    %761 = sbr.rel (0) target = $region17
  $region16: #{dqn_forward.1} parent=0 // pred_region
    _
  $region17: #{dqn_forward.1} parent=0 // pred_fallthru
    _
  // Predicated region
  $region18: #{dqn_forward.1} parent=0 // pred_check
    _
  $region19: #{dqn_forward.1} parent=0 // pred_check_branch
    %763 = sbr.rel (0) target = $region21
  $region20: #{dqn_forward.1} parent=0 // pred_region
    _
  $region21: #{dqn_forward.1} parent=0 // pred_fallthru
    _

</llo_original>
